<compile_context>
chip_gen: v7x
topology: tpu7x:2x2x1
jax: 0.10.0
libtpu: 0.0.40
codegen_flags: <defaults>
</compile_context>

<pallas_src>
import functools

import jax
import jax.numpy as jnp
import numpy as np
from jax import lax
from jax.experimental import pallas as pl
from jax.experimental.pallas import tpu as pltpu

MIDDLE_DIM = 128
BN_EPS = 1e-5

# Packed-parameter slab layout (single VMEM input; rows x 128 lanes, f32).
_SLAB_B2 = 0                        # row 0            : conv2d bias           (1, 128)
_SLAB_GAMMA = 1                     # row 1,  cols :C  : BN weight (gamma)     (1, C)
_SLAB_BETA = 2                      # row 2,  cols :C  : BN bias (frozen)      (1, C)
_SLAB_TB = 3                        # row 3,  col 0    : temporal-conv bias    (1, 1)
_SLAB_W1 = 8                        # rows 8:136, :3   : temporal-conv weight  (128, 3)
_SLAB_WFC = _SLAB_W1 + MIDDLE_DIM   # rows 136:136+C, :nc : FC weight (C, nc)


def _disc_kernel(x_ref, wcat_ref, slab_ref, msel_ref, attbn_ref, out_ref,
                 *, b, t, C, nc, eps):
    N = b * t
    x = x_ref[...]                                            # (N, C*h*w), time-major rows

    # Conv2d(featDim->128, [3,2], valid) on the 3x2 frame AND whole-extent avg_pool2d,
    # fused as one MXU matmul (weights pre-concatenated once in prepare_params).
    cp = jnp.dot(x, wcat_ref[...], preferred_element_type=jnp.float32)   # (N, 128+C)
    b2 = slab_ref[_SLAB_B2:_SLAB_B2 + 1, :]                              # (1, 128)
    a2 = jnp.maximum(cp[:, :MIDDLE_DIM] + b2, 0.0)                       # (N, 128)
    pooled = cp[:, MIDDLE_DIM:MIDDLE_DIM + C]                            # (N, C)

    # Conv1d(128->1, k=3, padding=1) along time.  Rows are time-major with batch
    # stride b, so temporal neighbours are +-b rows (cyclic roll + edge masks;
    # rolls/iota/masks stay on XLU/VPU slots which have slack -> kept per review).
    w1 = slab_ref[_SLAB_W1:_SLAB_W1 + MIDDLE_DIM, 0:3]                   # (128, 3)
    e2 = jnp.dot(a2, w1, preferred_element_type=jnp.float32)             # (N, 3)
    prev = pltpu.roll(e2, b, 0)          # prev[r] = e2[r-b]   (cyclic; masked below)
    nxt = pltpu.roll(e2, N - b, 0)       # nxt[r]  = e2[r+b]   (cyclic; masked below)
    row = lax.broadcasted_iota(jnp.int32, (N, 1), 0)
    b1 = slab_ref[_SLAB_TB:_SLAB_TB + 1, 0:1]                            # (1, 1)
    logit = (jnp.where(row >= b, prev[:, 0:1], 0.0)
             + e2[:, 1:2]
             + jnp.where(row < N - b, nxt[:, 2:3], 0.0)
             + b1)
    logit = jnp.maximum(logit, 0.0)                                      # (N, 1)

    # Per-batch-group max for a numerically safe softmax shift (a global max can
    # underflow an entire weaker group -> 0/0).  Rows of the same batch element sit
    # at stride b, and a cyclic roll by a multiple of b stays inside the group, so
    # ceil(log2(t)) roll+max steps place the exact group max in every row (XLU only).
    gmax = logit
    shift = b
    while shift < N:                                  # static Python loop
        gmax = jnp.maximum(gmax, pltpu.roll(gmax, shift, 0))
        shift *= 2
    p = jnp.exp(logit - gmax)                                            # (N, 1)

    # Softmax-weighted temporal sum of the pooled features, per batch element, via a
    # small batch-select matmul.  (num/den kept as two tiny dots: fusing them needs a
    # minor-dim concat whose relayout costs as much as the saved MXU push here.)
    msel = msel_ref[...]                                                 # (b, N)
    num = jnp.dot(msel, p * pooled, preferred_element_type=jnp.float32)  # (b, C)
    den = jnp.dot(msel, p, preferred_element_type=jnp.float32)           # (b, 1)
    att = num / den   # exact division (approx reciprocal would cost ~1e-3 rel. error)

    # BatchNorm1d: training-mode batch statistics, biased variance; then bias-free FC.
    gamma = slab_ref[_SLAB_GAMMA:_SLAB_GAMMA + 1, 0:C]                   # (1, C)
    beta = slab_ref[_SLAB_BETA:_SLAB_BETA + 1, 0:C]                      # (1, C)
    mean = jnp.mean(att, axis=0, keepdims=True)
    d = att - mean
    var = jnp.mean(d * d, axis=0, keepdims=True)
    y = d * lax.rsqrt(var + eps) * gamma + beta
    attbn_ref[...] = y                                                   # (b, C)
    wfc = slab_ref[_SLAB_WFC:_SLAB_WFC + C, 0:nc]                        # (C, nc)
    out_ref[...] = jnp.dot(y, wfc, preferred_element_type=jnp.float32)   # (b, nc)


def prepare_params(params, b, t):
    """One-time parameter packing, hoisted off the per-call path (perf review #1/#4)."""
    conv_w = jnp.asarray(params["conv_w"], jnp.float32)      # (128, C, h, w)
    _, C, h, w = conv_w.shape
    nc = params["fc_w"].shape[0]
    assert C <= 128 and nc <= 128 and conv_w.shape[0] == MIDDLE_DIM
    Chw = C * h * w
    N = b * t

    # Conv weight as matmul + whole-extent average-pool matrix (shape-static -> numpy),
    # concatenated so conv and pooling are a single MXU push inside the kernel.
    w2 = conv_w.reshape(MIDDLE_DIM, Chw).T                                # (Chw, 128)
    pool = np.repeat(np.eye(C, dtype=np.float32), h * w, axis=0) / float(h * w)
    wcat = jnp.concatenate([w2, jnp.asarray(pool)], axis=1)               # (Chw, 128+C)
    # NOTE(perf, v6e/v7x): if N scales to thousands of rows, cast x2/wcat to bf16 for
    # this matmul (keep f32 accumulation) for ~3-4x MXU throughput; irrelevant here.

    # All remaining small params packed into one VMEM slab -> one DMA instead of five.
    rows = _SLAB_WFC + ((C + 7) // 8) * 8
    slab = jnp.zeros((rows, 128), jnp.float32)
    slab = slab.at[_SLAB_B2, :MIDDLE_DIM].set(jnp.asarray(params["conv_b"], jnp.float32))
    slab = slab.at[_SLAB_GAMMA, :C].set(jnp.asarray(params["bn_w"], jnp.float32))
    slab = slab.at[_SLAB_BETA, :C].set(jnp.asarray(params["bn_b"], jnp.float32))
    slab = slab.at[_SLAB_TB, 0].set(jnp.asarray(params["tconv_b"], jnp.float32)[0])
    slab = slab.at[_SLAB_W1:_SLAB_W1 + MIDDLE_DIM, 0:3].set(
        jnp.asarray(params["tconv_w"], jnp.float32)[0])                   # (128, 3)
    slab = slab.at[_SLAB_WFC:_SLAB_WFC + C, 0:nc].set(
        jnp.asarray(params["fc_w"], jnp.float32).T)                       # (C, nc)

    # Batch-select matrix: row r of the time-major layout belongs to batch r % b.
    # TODO(synk): at production b*t, switch to a gridded kernel (tile N in whole
    # softmax groups, dimension_semantics=("parallel",)) so v7x's second TensorCore
    # is used and this O(b*N) matrix / the all-resident layout stay within VMEM.
    msel = jnp.asarray((np.arange(N)[None, :] % b) == np.arange(b)[:, None],
                       dtype=np.float32)                                  # (b, N)
    return {"wcat": wcat, "slab": slab, "msel": msel}


def discriminator_forward(x, b, t, nc, prep):
    n, C, h, w = x.shape
    N = b * t
    assert n == N
    assert (h - 2) * (w - 1) == 1, "module requires the [3,2] conv to yield 1x1 spatial"
    Chw = C * h * w

    # Free, contiguous reshape; the module's (t,b)->(b,t) permute is absorbed inside
    # the kernel (rows stay time-major), so this is the ONLY per-call op outside the
    # pallas_call.
    x2 = x.reshape(N, Chw)

    wcat, slab, msel = prep["wcat"], prep["slab"], prep["msel"]
    slab_rows = slab.shape[0]

    bytes_accessed = 4 * (N * Chw + Chw * (MIDDLE_DIM + C) + slab_rows * 128
                          + b * N + b * C + b * nc)
    cost = pl.CostEstimate(
        flops=(2 * N * Chw * (MIDDLE_DIM + C) + 2 * N * MIDDLE_DIM * 3
               + 2 * b * N * (C + 1) + 2 * b * C * nc),
        transcendentals=N,
        bytes_accessed=bytes_accessed)

    vmem = pl.BlockSpec(memory_space=pltpu.MemorySpace.VMEM)
    att_bn, out = pl.pallas_call(
        functools.partial(_disc_kernel, b=b, t=t, C=C, nc=nc, eps=BN_EPS),
        out_shape=(jax.ShapeDtypeStruct((b, C), jnp.float32),
                   jax.ShapeDtypeStruct((b, nc), jnp.float32)),
        in_specs=[vmem, vmem, vmem, vmem],
        out_specs=(vmem, vmem),
        compiler_params=pltpu.CompilerParams(
            # All-resident, un-gridded design: size the scoped VMEM limit from the
            # actual footprint (v5e scoped default is 16 MiB; v7x physical is 64 MiB).
            vmem_limit_bytes=int(min(96 * 2 ** 20,
                                     max(16 * 2 ** 20, 6 * bytes_accessed)))),
        cost_estimate=cost,
    )(x2, wcat, slab, msel)
    return att_bn, out


def reference_forward(x, b, t, params):
    """Pure-JAX reference matching the PyTorch forward (training-mode BN)."""
    n, C, h, w = x.shape
    x5 = jnp.transpose(x.reshape(t, b, C, h, w), (1, 0, 2, 3, 4)).reshape(b * t, C, h, w)
    # Conv2d valid [3,2] on a 3x2 input.
    a = jnp.einsum("nchw,ochw->no", x5, params["conv_w"]) + params["conv_b"]
    a = jax.nn.relu(a)                                                    # (b*t, 128)
    a = jnp.transpose(a.reshape(b, t, MIDDLE_DIM), (0, 2, 1))             # (b, 128, t)
    a_pad = jnp.pad(a, ((0, 0), (0, 0), (1, 1)))
    w1 = params["tconv_w"][0]                                             # (128, 3)
    logits = (jnp.einsum("bct,c->bt", a_pad[:, :, 0:t], w1[:, 0])
              + jnp.einsum("bct,c->bt", a_pad[:, :, 1:t + 1], w1[:, 1])
              + jnp.einsum("bct,c->bt", a_pad[:, :, 2:t + 2], w1[:, 2])
              + params["tconv_b"][0])
    a_att = jax.nn.relu(logits)                                           # (b, t)
    pooled = x5.mean(axis=(2, 3)).reshape(b, t, C)
    aw = jax.nn.softmax(a_att, axis=1)[..., None]
    att_x = jnp.sum(pooled * aw, axis=1)                                  # (b, C)
    mean = att_x.mean(axis=0, keepdims=True)
    var = ((att_x - mean) ** 2).mean(axis=0, keepdims=True)
    att_bn = (att_x - mean) / jnp.sqrt(var + BN_EPS) * params["bn_w"] + params["bn_b"]
    out = att_bn @ params["fc_w"].T
    return att_bn, out


if __name__ == "__main__":
    b, t = 2, 8
    feat_dim, num_classes = 32, 10
    h, w = 3, 2  # required so the [3,2] valid conv yields a 1x1 spatial output

    key = jax.random.PRNGKey(0)
    k1, k2, k3, k4, k5, kx = jax.random.split(key, 6)
    params = {
        "conv_w": jax.random.normal(k1, (MIDDLE_DIM, feat_dim, 3, 2), jnp.float32) * 0.05,
        "conv_b": jax.random.normal(k2, (MIDDLE_DIM,), jnp.float32) * 0.05,
        "tconv_w": jax.random.normal(k3, (1, MIDDLE_DIM, 3), jnp.float32) * 0.05,
        "tconv_b": jnp.full((1,), 0.01, jnp.float32),
        "fc_w": jax.random.normal(k4, (num_classes, feat_dim), jnp.float32) * 0.05,
        "bn_w": 1.0 + 0.1 * jax.random.normal(k5, (feat_dim,), jnp.float32),
        "bn_b": jnp.zeros((feat_dim,), jnp.float32),   # frozen (requires_grad_(False))
    }
    x = jax.random.normal(kx, (b * t, feat_dim, h, w), jnp.float32)

    # One-time parameter packing (off the per-call path).
    prep = prepare_params(params, b, t)
    jax.block_until_ready(prep)

    fwd = jax.jit(discriminator_forward, static_argnums=(1, 2, 3))
    att_bn, out = fwd(x, b, t, num_classes, prep)
    jax.block_until_ready((att_bn, out))

    ref_att, ref_out = reference_forward(x, b, t, params)
    assert att_bn.shape == (b, feat_dim) and out.shape == (b, num_classes)
    assert jnp.allclose(att_bn, ref_att, atol=1e-4, rtol=1e-4), "att_x mismatch"
    assert jnp.allclose(out, ref_out, atol=1e-4, rtol=1e-4), "logits mismatch"
    print("KERNEL_OK")
</pallas_src>

<mosaic_0001>
module attributes {stable_mosaic.version = 11 : i64} {
  func.func @_disc_kernel(%arg0: memref<16x192xf32, #tpu.memory_space<vmem>>, %arg1: memref<192x160xf32, #tpu.memory_space<vmem>>, %arg2: memref<168x128xf32, #tpu.memory_space<vmem>>, %arg3: memref<2x16xf32, #tpu.memory_space<vmem>>, %arg4: memref<2x32xf32, #tpu.memory_space<vmem>>, %arg5: memref<2x10xf32, #tpu.memory_space<vmem>>) attributes {dimension_semantics = [], scalar_prefetch = 0 : i64, scratch_operands = 0 : i64, tpu.core_type = #tpu.core_type<tc>} {
    %c0 = arith.constant 0 : index
    %c0_0 = arith.constant 0 : index
    %0 = vector.load %arg0[%c0, %c0_0] : memref<16x192xf32, #tpu.memory_space<vmem>>, vector<16x192xf32>
    %c0_1 = arith.constant 0 : index
    %c0_2 = arith.constant 0 : index
    %1 = vector.load %arg1[%c0_1, %c0_2] : memref<192x160xf32, #tpu.memory_space<vmem>>, vector<192x160xf32>
    %cst = arith.constant dense<0.000000e+00> : vector<16x160xf32>
    %2 = tpu.matmul %0, %1, %cst {dimension_numbers = #tpu.dot_dimension_numbers<[1], [0], [0], [1], [0, 0, 1, 1], [], []>} : vector<16x192xf32>, vector<192x160xf32>, vector<16x160xf32> -> vector<16x160xf32>
    %c0_3 = arith.constant 0 : index
    %c0_4 = arith.constant 0 : index
    %3 = vector.load %arg2[%c0_3, %c0_4] : memref<168x128xf32, #tpu.memory_space<vmem>>, vector<1x128xf32>
    %4 = vector.extract_strided_slice %2 {offsets = [0, 0], sizes = [16, 128], strides = [1, 1]} : vector<16x160xf32> to vector<16x128xf32>
    %5 = vector.broadcast %3 : vector<1x128xf32> to vector<16x128xf32>
    %6 = arith.addf %4, %5 : vector<16x128xf32>
    %cst_5 = arith.constant 0.000000e+00 : f32
    %7 = vector.broadcast %cst_5 : f32 to vector<16x128xf32>
    %8 = arith.maximumf %6, %7 : vector<16x128xf32>
    %9 = vector.extract_strided_slice %2 {offsets = [0, 128], sizes = [16, 32], strides = [1, 1]} : vector<16x160xf32> to vector<16x32xf32>
    %c8 = arith.constant 8 : index
    %c0_6 = arith.constant 0 : index
    %10 = vector.load %arg2[%c8, %c0_6] : memref<168x128xf32, #tpu.memory_space<vmem>>, vector<128x3xf32>
    %cst_7 = arith.constant dense<0.000000e+00> : vector<16x3xf32>
    %11 = tpu.matmul %8, %10, %cst_7 {dimension_numbers = #tpu.dot_dimension_numbers<[1], [0], [0], [1], [0, 0, 1, 1], [], []>} : vector<16x128xf32>, vector<128x3xf32>, vector<16x3xf32> -> vector<16x3xf32>
    %c2_i32 = arith.constant 2 : i32
    %12 = tpu.dynamic_rotate %11 by %c2_i32 dim 0 : vector<16x3xf32>, i32 -> vector<16x3xf32>
    %c14_i32 = arith.constant 14 : i32
    %13 = tpu.dynamic_rotate %11 by %c14_i32 dim 0 : vector<16x3xf32>, i32 -> vector<16x3xf32>
    %14 = tpu.iota {dimensions = array<i32: 0>} : vector<16x1xi32>
    %c3 = arith.constant 3 : index
    %c0_8 = arith.constant 0 : index
    %15 = vector.load %arg2[%c3, %c0_8] : memref<168x128xf32, #tpu.memory_space<vmem>>, vector<1x1xf32>
    %c2_i32_9 = arith.constant 2 : i32
    %16 = vector.broadcast %c2_i32_9 : i32 to vector<16x1xi32>
    %17 = arith.cmpi sge, %14, %16 : vector<16x1xi32>
    %18 = vector.extract_strided_slice %12 {offsets = [0, 0], sizes = [16, 1], strides = [1, 1]} : vector<16x3xf32> to vector<16x1xf32>
    %cst_10 = arith.constant 0.000000e+00 : f32
    %19 = vector.broadcast %cst_10 : f32 to vector<16x1xf32>
    %20 = arith.select %17, %18, %19 : vector<16x1xi1>, vector<16x1xf32>
    %21 = vector.extract_strided_slice %11 {offsets = [0, 1], sizes = [16, 1], strides = [1, 1]} : vector<16x3xf32> to vector<16x1xf32>
    %22 = arith.addf %20, %21 : vector<16x1xf32>
    %c14_i32_11 = arith.constant 14 : i32
    %23 = vector.broadcast %c14_i32_11 : i32 to vector<16x1xi32>
    %24 = arith.cmpi slt, %14, %23 : vector<16x1xi32>
    %25 = vector.extract_strided_slice %13 {offsets = [0, 2], sizes = [16, 1], strides = [1, 1]} : vector<16x3xf32> to vector<16x1xf32>
    %cst_12 = arith.constant 0.000000e+00 : f32
    %26 = vector.broadcast %cst_12 : f32 to vector<16x1xf32>
    %27 = arith.select %24, %25, %26 : vector<16x1xi1>, vector<16x1xf32>
    %28 = arith.addf %22, %27 : vector<16x1xf32>
    %29 = vector.broadcast %15 : vector<1x1xf32> to vector<16x1xf32>
    %30 = arith.addf %28, %29 : vector<16x1xf32>
    %cst_13 = arith.constant 0.000000e+00 : f32
    %31 = vector.broadcast %cst_13 : f32 to vector<16x1xf32>
    %32 = arith.maximumf %30, %31 : vector<16x1xf32>
    %c2_i32_14 = arith.constant 2 : i32
    %33 = tpu.dynamic_rotate %32 by %c2_i32_14 dim 0 : vector<16x1xf32>, i32 -> vector<16x1xf32>
    %34 = arith.maximumf %32, %33 : vector<16x1xf32>
    %c4_i32 = arith.constant 4 : i32
    %35 = tpu.dynamic_rotate %34 by %c4_i32 dim 0 : vector<16x1xf32>, i32 -> vector<16x1xf32>
    %36 = arith.maximumf %34, %35 : vector<16x1xf32>
    %c8_i32 = arith.constant 8 : i32
    %37 = tpu.dynamic_rotate %36 by %c8_i32 dim 0 : vector<16x1xf32>, i32 -> vector<16x1xf32>
    %38 = arith.maximumf %36, %37 : vector<16x1xf32>
    %39 = arith.subf %32, %38 : vector<16x1xf32>
    %40 = math.exp %39 : vector<16x1xf32>
    %c0_15 = arith.constant 0 : index
    %c0_16 = arith.constant 0 : index
    %41 = vector.load %arg3[%c0_15, %c0_16] : memref<2x16xf32, #tpu.memory_space<vmem>>, vector<2x16xf32>
    %42 = vector.broadcast %40 : vector<16x1xf32> to vector<16x32xf32>
    %43 = arith.mulf %42, %9 : vector<16x32xf32>
    %cst_17 = arith.constant dense<0.000000e+00> : vector<2x32xf32>
    %44 = tpu.matmul %41, %43, %cst_17 {dimension_numbers = #tpu.dot_dimension_numbers<[1], [0], [0], [1], [0, 0, 1, 1], [], []>} : vector<2x16xf32>, vector<16x32xf32>, vector<2x32xf32> -> vector<2x32xf32>
    %cst_18 = arith.constant dense<0.000000e+00> : vector<2x1xf32>
    %45 = tpu.matmul %41, %40, %cst_18 {dimension_numbers = #tpu.dot_dimension_numbers<[1], [0], [0], [1], [0, 0, 1, 1], [], []>} : vector<2x16xf32>, vector<16x1xf32>, vector<2x1xf32> -> vector<2x1xf32>
    %46 = vector.broadcast %45 : vector<2x1xf32> to vector<2x32xf32>
    %47 = arith.divf %44, %46 : vector<2x32xf32>
    %c1 = arith.constant 1 : index
    %c0_19 = arith.constant 0 : index
    %48 = vector.load %arg2[%c1, %c0_19] : memref<168x128xf32, #tpu.memory_space<vmem>>, vector<1x32xf32>
    %c2 = arith.constant 2 : index
    %c0_20 = arith.constant 0 : index
    %49 = vector.load %arg2[%c2, %c0_20] : memref<168x128xf32, #tpu.memory_space<vmem>>, vector<1x32xf32>
    %cst_21 = arith.constant dense<0.000000e+00> : vector<32xf32>
    %50 = vector.multi_reduction <add>, %47, %cst_21 [0] : vector<2x32xf32> to vector<32xf32>
    %51 = vector.shape_cast %50 : vector<32xf32> to vector<1x32xf32>
    %cst_22 = arith.constant 2.000000e+00 : f32
    %52 = vector.broadcast %cst_22 : f32 to vector<1x32xf32>
    %53 = arith.divf %51, %52 : vector<1x32xf32>
    %54 = vector.broadcast %53 : vector<1x32xf32> to vector<2x32xf32>
    %55 = arith.subf %47, %54 : vector<2x32xf32>
    %56 = arith.mulf %55, %55 : vector<2x32xf32>
    %cst_23 = arith.constant dense<0.000000e+00> : vector<32xf32>
    %57 = vector.multi_reduction <add>, %56, %cst_23 [0] : vector<2x32xf32> to vector<32xf32>
    %58 = vector.shape_cast %57 : vector<32xf32> to vector<1x32xf32>
    %cst_24 = arith.constant 2.000000e+00 : f32
    %59 = vector.broadcast %cst_24 : f32 to vector<1x32xf32>
    %60 = arith.divf %58, %59 : vector<1x32xf32>
    %cst_25 = arith.constant 9.99999974E-6 : f32
    %61 = vector.broadcast %cst_25 : f32 to vector<1x32xf32>
    %62 = arith.addf %60, %61 : vector<1x32xf32>
    %63 = math.rsqrt %62 : vector<1x32xf32>
    %64 = vector.broadcast %63 : vector<1x32xf32> to vector<2x32xf32>
    %65 = arith.mulf %55, %64 : vector<2x32xf32>
    %66 = vector.broadcast %48 : vector<1x32xf32> to vector<2x32xf32>
    %67 = arith.mulf %65, %66 : vector<2x32xf32>
    %68 = vector.broadcast %49 : vector<1x32xf32> to vector<2x32xf32>
    %69 = arith.addf %67, %68 : vector<2x32xf32>
    %c0_26 = arith.constant 0 : index
    %c0_27 = arith.constant 0 : index
    %70 = vector.load %arg4[%c0_26, %c0_27] : memref<2x32xf32, #tpu.memory_space<vmem>>, vector<2x32xf32>
    tpu.vector_store %arg4[%c0_26, %c0_27], %69 {strides = array<i32>} : memref<2x32xf32, #tpu.memory_space<vmem>>, vector<2x32xf32>,
    %c136 = arith.constant 136 : index
    %c0_28 = arith.constant 0 : index
    %71 = vector.load %arg2[%c136, %c0_28] : memref<168x128xf32, #tpu.memory_space<vmem>>, vector<32x10xf32>
    %cst_29 = arith.constant dense<0.000000e+00> : vector<2x10xf32>
    %72 = tpu.matmul %69, %71, %cst_29 {dimension_numbers = #tpu.dot_dimension_numbers<[1], [0], [0], [1], [0, 0, 1, 1], [], []>} : vector<2x32xf32>, vector<32x10xf32>, vector<2x10xf32> -> vector<2x10xf32>
    %c0_30 = arith.constant 0 : index
    %c0_31 = arith.constant 0 : index
    %73 = vector.load %arg5[%c0_30, %c0_31] : memref<2x10xf32, #tpu.memory_space<vmem>>, vector<2x10xf32>
    tpu.vector_store %arg5[%c0_30, %c0_31], %72 {strides = array<i32>} : memref<2x10xf32, #tpu.memory_space<vmem>>, vector<2x10xf32>,
    return
  }
}

</mosaic_0001>

<llo_original>
// kernel: discriminator_forward.1
$region0: #{discriminator_forward.1}
  #allocation0 [shape = 'u32[]', space=smem, size = 0x4, offset = 0x4, fixed_abs, tag = 'smem constant byte address 0x4 - core index']
  #allocation1 [shape = 'u32[144,128]{1,0:T(1,128)}', space=vmem, size = 0x12000, scoped, tag = 'internal scratch']
  %s0 = inlined_call_operand.vmem [shape: f32[16,192], index: 0, kind: input, shape index: {}]
  %s1 = inlined_call_operand.vmem [shape: f32[192,160], index: 1, kind: input, shape index: {}]
  %s2 = inlined_call_operand.vmem [shape: f32[168,128], index: 2, kind: input, shape index: {}]
  %s3 = inlined_call_operand.vmem [shape: f32[2,16], index: 3, kind: input, shape index: {}]
  %s4 = inlined_call_operand.hbm [shape: f32[2,32], index: 4, kind: output, shape index: {0}]
  %s5 = inlined_call_operand.hbm [shape: f32[2,10], index: 5, kind: output, shape index: {1}]
  %6 = xla_tuple %s4, %s5
  %s7 = sld [smem:[#allocation0]]
  $region34: #{discriminator_forward.1} parent=0
    _
  %s9 = ssub.s32 1, %s7
  %s10 = scalar_select 0, %s9, %s7
  $region1: #{discriminator_forward.1} parent=0
    #allocation2 [shape = 'u8[1024]{0}', space=vmem, size = 0x400, scoped, tag = 'output window, operand 0, single buffered']
    #allocation3 [shape = 's32[1]{0}', space=sflag, size = 0x4, scoped, tag = 'scoped memory for discriminator_forward.1']
    #allocation4 [shape = 'u8[1024]{0}', space=vmem, size = 0x400, scoped, tag = 'output window, operand 1, single buffered']
    #allocation5 [shape = 's32[1]{0}', space=sflag, size = 0x4, scoped, tag = 'scoped memory for discriminator_forward.1']
    %11 = vsyncpa [#allocation3], 0
    %12 = vsyncpa [#allocation5], 0
    // Predicated region
    $region2: #{discriminator_forward.1} parent=1 // pred_check
      _
    $region3: #{discriminator_forward.1} parent=1 // pred_check_branch
      %14 = sbr.rel (0) target = $region5
    $region4: #{discriminator_forward.1} parent=1 // pred_region
      _
    $region5: #{discriminator_forward.1} parent=1 // pred_fallthru
      _
    // Predicated region
    $region6: #{discriminator_forward.1} parent=1 // pred_check
      _
    $region7: #{discriminator_forward.1} parent=1 // pred_check_branch
      %16 = sbr.rel (0) target = $region9
    $region8: #{discriminator_forward.1} parent=1 // pred_region
      _
    $region9: #{discriminator_forward.1} parent=1 // pred_fallthru
      _
    // Predicated region
    $region10: #{discriminator_forward.1} parent=1 // pred_check
      _
    $region11: #{discriminator_forward.1} parent=1 // pred_check_branch
      %18 = sbr.rel (0) target = $region13
    $region12: #{discriminator_forward.1} parent=1 // pred_region
      _
    $region13: #{discriminator_forward.1} parent=1 // pred_fallthru
      _
    // Predicated region
    $region14: #{discriminator_forward.1} parent=1 // pred_check
      _
    $region15: #{discriminator_forward.1} parent=1 // pred_check_branch
      %20 = sbr.rel (0) target = $region17
    $region16: #{discriminator_forward.1} parent=1 // pred_region
      _
    $region17: #{discriminator_forward.1} parent=1 // pred_fallthru
      _
    %v21 = vld [vmem:[%s0] sm:$0xff]
    %v22 = vld [vmem:[%s0 + $0x8] sm:$0xff]
    %v23 = vld [vmem:[%s0 + $0x10] sm:$0xff]
    %v24 = vld [vmem:[%s0 + $0x18] sm:$0xff]
    %v25 = vld [vmem:[%s1] sm:$0xff]
    %v26 = vld [vmem:[%s1 + $0x8] sm:$0xff]
    %v27 = vld [vmem:[%s1 + $0x10] sm:$0xff]
    %v28 = vld [vmem:[%s1 + $0x18] sm:$0xff]
    %v29 = vld [vmem:[%s1 + $0x20] sm:$0xff]
    %v30 = vld [vmem:[%s1 + $0x28] sm:$0xff]
    %v31 = vld [vmem:[%s1 + $0x30] sm:$0xff]
    %v32 = vld [vmem:[%s1 + $0x38] sm:$0xff]
    %v33 = vld [vmem:[%s1 + $0x40] sm:$0xff]
    %v34 = vld [vmem:[%s1 + $0x48] sm:$0xff]
    %v35 = vld [vmem:[%s1 + $0x50] sm:$0xff]
    %v36 = vld [vmem:[%s1 + $0x58] sm:$0xff]
    %v37 = vld [vmem:[%s1 + $0x60] sm:$0xff]
    %v38 = vld [vmem:[%s1 + $0x68] sm:$0xff]
    %v39 = vld [vmem:[%s1 + $0x70] sm:$0xff]
    %v40 = vld [vmem:[%s1 + $0x78] sm:$0xff]
    %v41 = vld [vmem:[%s1 + $0x80] sm:$0xff]
    %v42 = vld [vmem:[%s1 + $0x88] sm:$0xff]
    %v43 = vld [vmem:[%s1 + $0x90] sm:$0xff]
    %v44 = vld [vmem:[%s1 + $0x98] sm:$0xff]
    %v45 = vld [vmem:[%s1 + $0xa0] sm:$0xff]
    %v46 = vld [vmem:[%s1 + $0xa8] sm:$0xff]
    %v47 = vld [vmem:[%s1 + $0xb0] sm:$0xff]
    %v48 = vld [vmem:[%s1 + $0xb8] sm:$0xff]
    %v49 = vld [vmem:[%s1 + $0xc0] sm:$0xff]
    %v50 = vld [vmem:[%s1 + $0xc8] sm:$0xff]
    %v51 = vld [vmem:[%s1 + $0xd0] sm:$0xff]
    %v52 = vld [vmem:[%s1 + $0xd8] sm:$0xff]
    %v53 = vld [vmem:[%s1 + $0xe0] sm:$0xff]
    %v54 = vld [vmem:[%s1 + $0xe8] sm:$0xff]
    %v55 = vld [vmem:[%s1 + $0xf0] sm:$0xff]
    %v56 = vld [vmem:[%s1 + $0xf8] sm:$0xff]
    %v57 = vld [vmem:[%s1 + $0x100] sm:$0xff]
    %v58 = vld [vmem:[%s1 + $0x108] sm:$0xff]
    %v59 = vld [vmem:[%s1 + $0x110] sm:$0xff]
    %v60 = vld [vmem:[%s1 + $0x118] sm:$0xff]
    %v61 = vld [vmem:[%s1 + $0x120] sm:$0xff]
    %v62 = vld [vmem:[%s1 + $0x128] sm:$0xff]
    %v63 = vld [vmem:[%s1 + $0x130] sm:$0xff]
    %v64 = vld [vmem:[%s1 + $0x138] sm:$0xff]
    %v65 = vld [vmem:[%s1 + $0x140] sm:$0xff]
    %v66 = vld [vmem:[%s1 + $0x148] sm:$0xff]
    %v67 = vld [vmem:[%s1 + $0x150] sm:$0xff]
    %v68 = vld [vmem:[%s1 + $0x158] sm:$0xff]
    %v69 = vld [vmem:[%s1 + $0x160] sm:$0xff]
    %v70 = vld [vmem:[%s1 + $0x168] sm:$0xff]
    %v71 = vld [vmem:[%s1 + $0x170] sm:$0xff]
    %v72 = vld [vmem:[%s1 + $0x178] sm:$0xff]
    %vm73 = vcmask 523264
    %v75 = vsel %vm73, %v22, 0
    %v78 = vsel %vm73, %v24, 0
    %80 = vmatprep.subr.mxu0 %v26
    %81 = vmatpush1.msra.mxu0 %v25
    %82 = vmatprep.subr.mxu0 %v28
    %83 = vmatpush1.msra.mxu0 %v27
    %84 = vmatprep.subr.mxu0 %v30
    %85 = vmatpush1.msra.mxu0 %v29
    %86 = vmatprep.subr.mxu0 %v32
    %87 = vmatpush1.msra.mxu0 %v31
    %88 = vmatprep.subr.mxu0 %v34
    %89 = vmatpush1.msra.mxu0 %v33
    %90 = vmatprep.subr.mxu0 %v36
    %91 = vmatpush1.msra.mxu0 %v35
    %92 = vmatprep.subr.mxu0 %v38
    %93 = vmatpush1.msra.mxu0 %v37
    %94 = vmatprep.subr.mxu0 %v40
    %95 = vmatpush1.msra.mxu0 %v39
    %96 = vmatprep.subr.mxu0 %v42
    %97 = vmatpush1.msra.mxu0 %v41
    %98 = vmatprep.subr.mxu0 %v44
    %99 = vmatpush1.msra.mxu0 %v43
    %100 = vmatprep.subr.mxu0 %v46
    %101 = vmatpush1.msra.mxu0 %v45
    %102 = vmatprep.subr.mxu0 %v48
    %103 = vmatpush1.msra.mxu0 %v47
    %104 = vmatprep.subr.mxu0 %v50
    %105 = vmatpush1.msra.mxu0 %v49
    %106 = vmatprep.subr.mxu0 %v52
    %107 = vmatpush1.msra.mxu0 %v51
    %108 = vmatprep.subr.mxu0 %v54
    %109 = vmatpush1.msra.mxu0 %v53
    %110 = vmatprep.subr.mxu0 %v56
    %111 = vmatpush1.msra.mxu0 %v55
    %112 = vmatprep.subr.mxu0 %v58
    %113 = vmatpush1.msra.mxu0 %v57
    %114 = vmatprep.subr.mxu0 %v60
    %115 = vmatpush1.msra.mxu0 %v59
    %116 = vmatprep.subr.mxu0 %v62
    %117 = vmatpush1.msra.mxu0 %v61
    %118 = vmatprep.subr.mxu0 %v64
    %119 = vmatpush1.msra.mxu0 %v63
    %120 = vmatprep.subr.mxu0 %v66
    %121 = vmatpush1.msra.mxu0 %v65
    %122 = vmatprep.subr.mxu0 %v68
    %123 = vmatpush1.msra.mxu0 %v67
    %124 = vmatprep.subr.mxu0 %v70
    %125 = vmatpush1.msra.mxu0 %v69
    %126 = vmatprep.subr.mxu0 %v72
    %127 = vmatpush1.msra.mxu0 %v71
    %128 = vmatprep.subr.mxu0 0.0
    %129 = vmatpush1.msra.mxu0 0.0
    %130 = vmatprep.subr.mxu0 0.0
    %131 = vmatpush1.msra.mxu0 0.0
    %132 = vmatprep.subr.mxu0 0.0
    %133 = vmatpush1.msra.mxu0 0.0
    %134 = vmatprep.subr.mxu0 0.0
    %135 = vmatpush1.msra.mxu0 0.0
    %136 = vmatprep.subr.mxu0 0.0
    %137 = vmatpush1.msra.mxu0 0.0
    %138 = vmatprep.subr.mxu0 0.0
    %139 = vmatpush1.msra.mxu0 0.0
    %140 = vmatprep.subr.mxu0 0.0
    %141 = vmatpush1.msra.mxu0 0.0
    %142 = vmatprep.subr.mxu0 0.0
    %143 = vmatpush1.msra.mxu0 0.0
    %144 = vmatprep.mubr.f32.mxu0 %v75
    %145 = vmatmul.mubr.f32.gmra.mrb[0].mxu0 %v21
    %v146 = vpop.f32.mrb[0].mxu0
    %v147 = vadd.f32 0.0, %v146
    %v148 = vpop.f32.mrb[0].mxu0
    %v149 = vadd.f32 0.0, %v148
    %150 = vmatprep.mubr.f32.mxu0 %v78
    %151 = vmatmul.mubr.f32.gmra.mrb[0].mxu0 %v23
    %v152 = vpop.f32.mrb[0].mxu0
    %v153 = vadd.f32 0.0, %v152
    %v154 = vpop.f32.mrb[0].mxu0
    %v155 = vadd.f32 0.0, %v154
    %156 = vdwg.mxu0
    %v157 = vld [vmem:[%s2] sm:$0x1]
    %v158 = vlaneseq
    %v159 = vshrl.u32 %v158, 7
    %v160 = vsub.s32 0, %v159
    %v161 = vrot.slane %v157, %v160
    %v162 = vadd.f32 %v147, %v161
    %v163 = vadd.f32 %v153, %v161
    %v164 = vmax.f32 %v162, 0.0
    %v165 = vmax.f32 %v163, 0.0
    %v166 = vld [vmem:[%s2 + $0x8] sm:$0xff]
    %v167 = vld [vmem:[%s2 + $0x10] sm:$0xff]
    %v168 = vld [vmem:[%s2 + $0x18] sm:$0xff]
    %v169 = vld [vmem:[%s2 + $0x20] sm:$0xff]
    %v170 = vld [vmem:[%s2 + $0x28] sm:$0xff]
    %v171 = vld [vmem:[%s2 + $0x30] sm:$0xff]
    %v172 = vld [vmem:[%s2 + $0x38] sm:$0xff]
    %v173 = vld [vmem:[%s2 + $0x40] sm:$0xff]
    %v174 = vld [vmem:[%s2 + $0x48] sm:$0xff]
    %v175 = vld [vmem:[%s2 + $0x50] sm:$0xff]
    %v176 = vld [vmem:[%s2 + $0x58] sm:$0xff]
    %v177 = vld [vmem:[%s2 + $0x60] sm:$0xff]
    %v178 = vld [vmem:[%s2 + $0x68] sm:$0xff]
    %v179 = vld [vmem:[%s2 + $0x70] sm:$0xff]
    %v180 = vld [vmem:[%s2 + $0x78] sm:$0xff]
    %v181 = vld [vmem:[%s2 + $0x80] sm:$0xff]
    %182 = vmatprep.subr.mxu0 0.0
    %183 = vmatpush1.msra.mxu0 %v166
    %184 = vmatprep.subr.mxu0 0.0
    %185 = vmatpush1.msra.mxu0 %v167
    %186 = vmatprep.subr.mxu0 0.0
    %187 = vmatpush1.msra.mxu0 %v168
    %188 = vmatprep.subr.mxu0 0.0
    %189 = vmatpush1.msra.mxu0 %v169
    %190 = vmatprep.subr.mxu0 0.0
    %191 = vmatpush1.msra.mxu0 %v170
    %192 = vmatprep.subr.mxu0 0.0
    %193 = vmatpush1.msra.mxu0 %v171
    %194 = vmatprep.subr.mxu0 0.0
    %195 = vmatpush1.msra.mxu0 %v172
    %196 = vmatprep.subr.mxu0 0.0
    %197 = vmatpush1.msra.mxu0 %v173
    %198 = vmatprep.subr.mxu0 0.0
    %199 = vmatpush1.msra.mxu0 %v174
    %200 = vmatprep.subr.mxu0 0.0
    %201 = vmatpush1.msra.mxu0 %v175
    %202 = vmatprep.subr.mxu0 0.0
    %203 = vmatpush1.msra.mxu0 %v176
    %204 = vmatprep.subr.mxu0 0.0
    %205 = vmatpush1.msra.mxu0 %v177
    %206 = vmatprep.subr.mxu0 0.0
    %207 = vmatpush1.msra.mxu0 %v178
    %208 = vmatprep.subr.mxu0 0.0
    %209 = vmatpush1.msra.mxu0 %v179
    %210 = vmatprep.subr.mxu0 0.0
    %211 = vmatpush1.msra.mxu0 %v180
    %212 = vmatprep.subr.mxu0 0.0
    %213 = vmatpush1.msra.mxu0 %v181
    %214 = vmatprep.subr.mxu0 0.0
    %215 = vmatpush1.msra.mxu0 0.0
    %216 = vmatprep.subr.mxu0 0.0
    %217 = vmatpush1.msra.mxu0 0.0
    %218 = vmatprep.subr.mxu0 0.0
    %219 = vmatpush1.msra.mxu0 0.0
    %220 = vmatprep.subr.mxu0 0.0
    %221 = vmatpush1.msra.mxu0 0.0
    %222 = vmatprep.subr.mxu0 0.0
    %223 = vmatpush1.msra.mxu0 0.0
    %224 = vmatprep.subr.mxu0 0.0
    %225 = vmatpush1.msra.mxu0 0.0
    %226 = vmatprep.subr.mxu0 0.0
    %227 = vmatpush1.msra.mxu0 0.0
    %228 = vmatprep.subr.mxu0 0.0
    %229 = vmatpush1.msra.mxu0 0.0
    %230 = vmatprep.subr.mxu0 0.0
    %231 = vmatpush1.msra.mxu0 0.0
    %232 = vmatprep.subr.mxu0 0.0
    %233 = vmatpush1.msra.mxu0 0.0
    %234 = vmatprep.subr.mxu0 0.0
    %235 = vmatpush1.msra.mxu0 0.0
    %236 = vmatprep.subr.mxu0 0.0
    %237 = vmatpush1.msra.mxu0 0.0
    %238 = vmatprep.subr.mxu0 0.0
    %239 = vmatpush1.msra.mxu0 0.0
    %240 = vmatprep.subr.mxu0 0.0
    %241 = vmatpush1.msra.mxu0 0.0
    %242 = vmatprep.subr.mxu0 0.0
    %243 = vmatpush1.msra.mxu0 0.0
    %244 = vmatprep.subr.mxu0 0.0
    %245 = vmatpush1.msra.mxu0 0.0
    %246 = vmatprep.mubr.f32.mxu0 0.0
    %247 = vmatmul.mubr.f32.gmra.mrb[0].mxu0 %v164
    %v248 = vpop.f32.mrb[0].mxu0
    %v249 = vadd.f32 0.0, %v248
    %v250 = vpop.f32.mrb[0].mxu0
    %251 = vmatprep.mubr.f32.mxu0 0.0
    %252 = vmatmul.mubr.f32.gmra.mrb[0].mxu0 %v165
    %v253 = vpop.f32.mrb[0].mxu0
    %v254 = vadd.f32 0.0, %v253
    %v255 = vpop.f32.mrb[0].mxu0
    %256 = vdwg.mxu0
    %v257 = vrot.slane %v249, 6
    %v258 = vrot.slane %v254, 6
    %v259 = vlaneseq
    %v260 = vshrl.u32 %v259, 7
    %vm261 = vcmp.lt.s32.totalorder %v260, 2
    %v262 = vsel %vm261, %v257, %v258
    %v263 = vsel %vm261, %v258, %v257
    %v264 = vrot.slane %v249, 2
    %v265 = vrot.slane %v254, 2
    %vm266 = vcmp.lt.s32.totalorder %v260, 6
    %v267 = vsel %vm266, %v264, %v265
    %v268 = vsel %vm266, %v265, %v264
    %v269 = vadd.s32 %v260, 8
    %v270 = vld [vmem:[%s2 + $0x3] sm:$0x1]
    %vm271 = vcmp.ge.s32.totalorder %v260, 2
    %vm272 = vcmp.ge.s32.totalorder %v269, 2
    %v273 = vsel %vm271, %v263, 0.0
    %v274 = vsel %vm272, %v262, 0.0
    %277 = vrot.lane.b32.xlu0 %v249, 127
    %v278 = vpop.permute.xlu0 %277
    %279 = vrot.lane.b32.xlu0 %v254, 127
    %v280 = vpop.permute.xlu0 %279
    %v283 = vadd.f32 %v273, %v278
    %v284 = vadd.f32 %v274, %v280
    %vm285 = vcmp.lt.s32.totalorder %v260, 14
    %vm286 = vcmp.lt.s32.totalorder %v269, 14
    %v287 = vsel %vm285, %v267, 0.0
    %v288 = vsel %vm286, %v268, 0.0
    %291 = vrot.lane.b32.xlu0 %v287, 126
    %v292 = vpop.permute.xlu0 %291
    %293 = vrot.lane.b32.xlu0 %v288, 126
    %v294 = vpop.permute.xlu0 %293
    %v297 = vadd.f32 %v283, %v292
    %v298 = vadd.f32 %v284, %v294
    %v299 = vlaneseq
    %v300 = vshrl.u32 %v299, 7
    %v301 = vsub.s32 0, %v300
    %v302 = vrot.slane %v270, %v301
    %v303 = vadd.f32 %v297, %v302
    %v304 = vadd.f32 %v298, %v302
    %v305 = vmax.f32 %v303, 0.0
    %v306 = vmax.f32 %v304, 0.0
    %v307 = vrot.slane %v305, 6
    %v308 = vrot.slane %v306, 6
    %v309 = vsel %vm261, %v307, %v308
    %v310 = vsel %vm261, %v308, %v307
    %v311 = vmax.f32 %v305, %v310
    %v312 = vmax.f32 %v306, %v309
    %v313 = vrot.slane %v311, 4
    %v314 = vrot.slane %v312, 4
    %vm315 = vcmp.lt.s32.totalorder %v260, 4
    %v316 = vsel %vm315, %v313, %v314
    %v317 = vsel %vm315, %v314, %v313
    %v318 = vmax.f32 %v311, %v317
    %v319 = vmax.f32 %v312, %v316
    %v320 = vmax.f32 %v318, %v319
    %v321 = vsub.f32 %v305, %v320
    %v322 = vsub.f32 %v306, %v320
    %v323 = vmul.f32 %v321, 1.442695
    %v324 = vpow.pop %v323
    %v325 = vmul.f32 %v322, 1.442695
    %v326 = vpow.pop %v325
    %v327 = vld [vmem:[%s3] sm:$0x3]
    %329 = vset.pattern.permute.xlu0 0
    %330 = vperm.xlu0 %329, %v324
    %v331 = vpop.permute.xlu0 %330
    %334 = vset.pattern.permute.xlu0 0
    %335 = vperm.xlu0 %334, %v326
    %v336 = vpop.permute.xlu0 %335
    %v338 = vmul.f32 %v331, %v149
    %v339 = vmul.f32 %v336, %v155
    %vm340 = vcmask 130048
    %v342 = vsel %vm340, %v327, 0
    %344 = vmatprep.subr.mxu0 0.0
    %345 = vmatpush1.msra.mxu0 %v338
    %346 = vmatprep.subr.mxu0 0.0
    %347 = vmatpush1.msra.mxu0 %v339
    %348 = vmatprep.subr.mxu0 0.0
    %349 = vmatpush1.msra.mxu0 0.0
    %350 = vmatprep.subr.mxu0 0.0
    %351 = vmatpush1.msra.mxu0 0.0
    %352 = vmatprep.subr.mxu0 0.0
    %353 = vmatpush1.msra.mxu0 0.0
    %354 = vmatprep.subr.mxu0 0.0
    %355 = vmatpush1.msra.mxu0 0.0
    %356 = vmatprep.subr.mxu0 0.0
    %357 = vmatpush1.msra.mxu0 0.0
    %358 = vmatprep.subr.mxu0 0.0
    %359 = vmatpush1.msra.mxu0 0.0
    %360 = vmatprep.subr.mxu0 0.0
    %361 = vmatpush1.msra.mxu0 0.0
    %362 = vmatprep.subr.mxu0 0.0
    %363 = vmatpush1.msra.mxu0 0.0
    %364 = vmatprep.subr.mxu0 0.0
    %365 = vmatpush1.msra.mxu0 0.0
    %366 = vmatprep.subr.mxu0 0.0
    %367 = vmatpush1.msra.mxu0 0.0
    %368 = vmatprep.subr.mxu0 0.0
    %369 = vmatpush1.msra.mxu0 0.0
    %370 = vmatprep.subr.mxu0 0.0
    %371 = vmatpush1.msra.mxu0 0.0
    %372 = vmatprep.subr.mxu0 0.0
    %373 = vmatpush1.msra.mxu0 0.0
    %374 = vmatprep.subr.mxu0 0.0
    %375 = vmatpush1.msra.mxu0 0.0
    %376 = vmatprep.subr.mxu0 0.0
    %377 = vmatpush1.msra.mxu0 0.0
    %378 = vmatprep.subr.mxu0 0.0
    %379 = vmatpush1.msra.mxu0 0.0
    %380 = vmatprep.subr.mxu0 0.0
    %381 = vmatpush1.msra.mxu0 0.0
    %382 = vmatprep.subr.mxu0 0.0
    %383 = vmatpush1.msra.mxu0 0.0
    %384 = vmatprep.subr.mxu0 0.0
    %385 = vmatpush1.msra.mxu0 0.0
    %386 = vmatprep.subr.mxu0 0.0
    %387 = vmatpush1.msra.mxu0 0.0
    %388 = vmatprep.subr.mxu0 0.0
    %389 = vmatpush1.msra.mxu0 0.0
    %390 = vmatprep.subr.mxu0 0.0
    %391 = vmatpush1.msra.mxu0 0.0
    %392 = vmatprep.subr.mxu0 0.0
    %393 = vmatpush1.msra.mxu0 0.0
    %394 = vmatprep.subr.mxu0 0.0
    %395 = vmatpush1.msra.mxu0 0.0
    %396 = vmatprep.subr.mxu0 0.0
    %397 = vmatpush1.msra.mxu0 0.0
    %398 = vmatprep.subr.mxu0 0.0
    %399 = vmatpush1.msra.mxu0 0.0
    %400 = vmatprep.subr.mxu0 0.0
    %401 = vmatpush1.msra.mxu0 0.0
    %402 = vmatprep.subr.mxu0 0.0
    %403 = vmatpush1.msra.mxu0 0.0
    %404 = vmatprep.subr.mxu0 0.0
    %405 = vmatpush1.msra.mxu0 0.0
    %406 = vmatprep.subr.mxu0 0.0
    %407 = vmatpush1.msra.mxu0 0.0
    %408 = vmatprep.mubr.f32.mxu0 0.0
    %409 = vmatmul.mubr.f32.gmra.mrb[0].mxu0 %v342
    %v410 = vpop.f32.mrb[0].mxu0
    %v411 = vadd.f32 0.0, %v410
    %v412 = vpop.f32.mrb[0].mxu0
    %413 = vdwg.mxu0
    %414 = vmatprep.subr.mxu0 0.0
    %415 = vmatpush1.msra.mxu0 %v324
    %416 = vmatprep.subr.mxu0 0.0
    %417 = vmatpush1.msra.mxu0 %v326
    %418 = vmatprep.subr.mxu0 0.0
    %419 = vmatpush1.msra.mxu0 0.0
    %420 = vmatprep.subr.mxu0 0.0
    %421 = vmatpush1.msra.mxu0 0.0
    %422 = vmatprep.subr.mxu0 0.0
    %423 = vmatpush1.msra.mxu0 0.0
    %424 = vmatprep.subr.mxu0 0.0
    %425 = vmatpush1.msra.mxu0 0.0
    %426 = vmatprep.subr.mxu0 0.0
    %427 = vmatpush1.msra.mxu0 0.0
    %428 = vmatprep.subr.mxu0 0.0
    %429 = vmatpush1.msra.mxu0 0.0
    %430 = vmatprep.subr.mxu0 0.0
    %431 = vmatpush1.msra.mxu0 0.0
    %432 = vmatprep.subr.mxu0 0.0
    %433 = vmatpush1.msra.mxu0 0.0
    %434 = vmatprep.subr.mxu0 0.0
    %435 = vmatpush1.msra.mxu0 0.0
    %436 = vmatprep.subr.mxu0 0.0
    %437 = vmatpush1.msra.mxu0 0.0
    %438 = vmatprep.subr.mxu0 0.0
    %439 = vmatpush1.msra.mxu0 0.0
    %440 = vmatprep.subr.mxu0 0.0
    %441 = vmatpush1.msra.mxu0 0.0
    %442 = vmatprep.subr.mxu0 0.0
    %443 = vmatpush1.msra.mxu0 0.0
    %444 = vmatprep.subr.mxu0 0.0
    %445 = vmatpush1.msra.mxu0 0.0
    %446 = vmatprep.subr.mxu0 0.0
    %447 = vmatpush1.msra.mxu0 0.0
    %448 = vmatprep.subr.mxu0 0.0
    %449 = vmatpush1.msra.mxu0 0.0
    %450 = vmatprep.subr.mxu0 0.0
    %451 = vmatpush1.msra.mxu0 0.0
    %452 = vmatprep.subr.mxu0 0.0
    %453 = vmatpush1.msra.mxu0 0.0
    %454 = vmatprep.subr.mxu0 0.0
    %455 = vmatpush1.msra.mxu0 0.0
    %456 = vmatprep.subr.mxu0 0.0
    %457 = vmatpush1.msra.mxu0 0.0
    %458 = vmatprep.subr.mxu0 0.0
    %459 = vmatpush1.msra.mxu0 0.0
    %460 = vmatprep.subr.mxu0 0.0
    %461 = vmatpush1.msra.mxu0 0.0
    %462 = vmatprep.subr.mxu0 0.0
    %463 = vmatpush1.msra.mxu0 0.0
    %464 = vmatprep.subr.mxu0 0.0
    %465 = vmatpush1.msra.mxu0 0.0
    %466 = vmatprep.subr.mxu0 0.0
    %467 = vmatpush1.msra.mxu0 0.0
    %468 = vmatprep.subr.mxu0 0.0
    %469 = vmatpush1.msra.mxu0 0.0
    %470 = vmatprep.subr.mxu0 0.0
    %471 = vmatpush1.msra.mxu0 0.0
    %472 = vmatprep.subr.mxu0 0.0
    %473 = vmatpush1.msra.mxu0 0.0
    %474 = vmatprep.subr.mxu0 0.0
    %475 = vmatpush1.msra.mxu0 0.0
    %476 = vmatprep.subr.mxu0 0.0
    %477 = vmatpush1.msra.mxu0 0.0
    %478 = vmatprep.mubr.f32.mxu0 0.0
    %479 = vmatmul.mubr.f32.gmra.mrb[0].mxu0 %v342
    %v480 = vpop.f32.mrb[0].mxu0
    %v481 = vadd.f32 0.0, %v480
    %v482 = vpop.f32.mrb[0].mxu0
    %483 = vdwg.mxu0
    %485 = vset.pattern.permute.xlu0 0
    %486 = vperm.xlu0 %485, %v481
    %v487 = vpop.permute.xlu0 %486
    %v489 = vrcp.pop %v487
    %v490 = vmul.f32 %v411, %v489
    %v491 = vld [vmem:[%s2 + $0x1] sm:$0x1]
    %v492 = vld [vmem:[%s2 + $0x2] sm:$0x1]
    %vm493 = vcmask 254976
    %v494 = vsel %vm493, %v490, 0.0
    %v495 = vrot.slane %v494, 4
    %v496 = vadd.f32 %v494, %v495
    %v497 = vrot.slane %v496, 2
    %v498 = vadd.f32 %v496, %v497
    %v499 = vrot.slane %v498, 1
    %v500 = vadd.f32 %v498, %v499
    %v501 = vrcp.pop 2.0
    %v502 = vmul.f32 %v500, %v501
    %v503 = vsub.f32 %v490, %v502
    %v504 = vmul.f32 %v503, %v503
    %v505 = vsel %vm493, %v504, 0.0
    %v506 = vrot.slane %v505, 4
    %v507 = vadd.f32 %v505, %v506
    %v508 = vrot.slane %v507, 2
    %v509 = vadd.f32 %v507, %v508
    %v510 = vrot.slane %v509, 1
    %v511 = vadd.f32 %v509, %v510
    %v512 = vmul.f32 %v511, %v501
    %v513 = vadd.f32 %v512, 1e-05
    %v514 = vrsqrt.pop %v513
    %v515 = vmul.f32 %v503, %v514
    %v516 = vlaneseq
    %v517 = vshrl.u32 %v516, 7
    %v518 = vsub.s32 0, %v517
    %v519 = vrot.slane %v491, %v518
    %v520 = vmul.f32 %v515, %v519
    %v521 = vlaneseq
    %v522 = vshrl.u32 %v521, 7
    %v523 = vsub.s32 0, %v522
    %v524 = vrot.slane %v492, %v523
    %v525 = vadd.f32 %v520, %v524
    %526 = vst.msk [vmem:[#allocation2] sm:$0x3] %vm493, %v525
    %v527 = vld [vmem:[%s2 + $0x88] sm:$0xff]
    %v528 = vld [vmem:[%s2 + $0x90] sm:$0xff]
    %v529 = vld [vmem:[%s2 + $0x98] sm:$0xff]
    %v530 = vld [vmem:[%s2 + $0xa0] sm:$0xff]
    %vm531 = vcmask 261120
    %v533 = vsel %vm531, %v525, 0
    %535 = vmatprep.subr.mxu0 0.0
    %536 = vmatpush1.msra.mxu0 %v527
    %537 = vmatprep.subr.mxu0 0.0
    %538 = vmatpush1.msra.mxu0 %v528
    %539 = vmatprep.subr.mxu0 0.0
    %540 = vmatpush1.msra.mxu0 %v529
    %541 = vmatprep.subr.mxu0 0.0
    %542 = vmatpush1.msra.mxu0 %v530
    %543 = vmatprep.subr.mxu0 0.0
    %544 = vmatpush1.msra.mxu0 0.0
    %545 = vmatprep.subr.mxu0 0.0
    %546 = vmatpush1.msra.mxu0 0.0
    %547 = vmatprep.subr.mxu0 0.0
    %548 = vmatpush1.msra.mxu0 0.0
    %549 = vmatprep.subr.mxu0 0.0
    %550 = vmatpush1.msra.mxu0 0.0
    %551 = vmatprep.subr.mxu0 0.0
    %552 = vmatpush1.msra.mxu0 0.0
    %553 = vmatprep.subr.mxu0 0.0
    %554 = vmatpush1.msra.mxu0 0.0
    %555 = vmatprep.subr.mxu0 0.0
    %556 = vmatpush1.msra.mxu0 0.0
    %557 = vmatprep.subr.mxu0 0.0
    %558 = vmatpush1.msra.mxu0 0.0
    %559 = vmatprep.subr.mxu0 0.0
    %560 = vmatpush1.msra.mxu0 0.0
    %561 = vmatprep.subr.mxu0 0.0
    %562 = vmatpush1.msra.mxu0 0.0
    %563 = vmatprep.subr.mxu0 0.0
    %564 = vmatpush1.msra.mxu0 0.0
    %565 = vmatprep.subr.mxu0 0.0
    %566 = vmatpush1.msra.mxu0 0.0
    %567 = vmatprep.subr.mxu0 0.0
    %568 = vmatpush1.msra.mxu0 0.0
    %569 = vmatprep.subr.mxu0 0.0
    %570 = vmatpush1.msra.mxu0 0.0
    %571 = vmatprep.subr.mxu0 0.0
    %572 = vmatpush1.msra.mxu0 0.0
    %573 = vmatprep.subr.mxu0 0.0
    %574 = vmatpush1.msra.mxu0 0.0
    %575 = vmatprep.subr.mxu0 0.0
    %576 = vmatpush1.msra.mxu0 0.0
    %577 = vmatprep.subr.mxu0 0.0
    %578 = vmatpush1.msra.mxu0 0.0
    %579 = vmatprep.subr.mxu0 0.0
    %580 = vmatpush1.msra.mxu0 0.0
    %581 = vmatprep.subr.mxu0 0.0
    %582 = vmatpush1.msra.mxu0 0.0
    %583 = vmatprep.subr.mxu0 0.0
    %584 = vmatpush1.msra.mxu0 0.0
    %585 = vmatprep.subr.mxu0 0.0
    %586 = vmatpush1.msra.mxu0 0.0
    %587 = vmatprep.subr.mxu0 0.0
    %588 = vmatpush1.msra.mxu0 0.0
    %589 = vmatprep.subr.mxu0 0.0
    %590 = vmatpush1.msra.mxu0 0.0
    %591 = vmatprep.subr.mxu0 0.0
    %592 = vmatpush1.msra.mxu0 0.0
    %593 = vmatprep.subr.mxu0 0.0
    %594 = vmatpush1.msra.mxu0 0.0
    %595 = vmatprep.subr.mxu0 0.0
    %596 = vmatpush1.msra.mxu0 0.0
    %597 = vmatprep.subr.mxu0 0.0
    %598 = vmatpush1.msra.mxu0 0.0
    %599 = vmatprep.mubr.f32.mxu0 0.0
    %600 = vmatmul.mubr.f32.gmra.mrb[0].mxu0 %v533
    %v601 = vpop.f32.mrb[0].mxu0
    %v602 = vadd.f32 0.0, %v601
    %v603 = vpop.f32.mrb[0].mxu0
    %604 = vdwg.mxu0
    %vm605 = vcmask 74752
    %606 = vst.msk [vmem:[#allocation4] sm:$0x3] %vm605, %v602
    // Predicated region
    $region18: #{discriminator_forward.1} parent=1 // pred_check
      _
    $region19: #{discriminator_forward.1} parent=1 // pred_check_branch
      %608 = sbr.rel (0) target = $region21
    $region20: #{discriminator_forward.1} parent=1 // pred_region
      %s610 = ssub.s32 32, 32
      %611 = vsyncadd [#allocation3], %s610
      %s613 = sshll.u32 [#allocation2], 4
      %s614 = int_to_ptr.vmem [resolvable:$true] %s613
      %616 = dma.vmem_to_hbm [thread:$0]  %s614, 32, %s4, [#allocation3]
    $region21: #{discriminator_forward.1} parent=1 // pred_fallthru
      _
    // Predicated region
    $region22: #{discriminator_forward.1} parent=1 // pred_check
      _
    $region23: #{discriminator_forward.1} parent=1 // pred_check_branch
      %618 = sbr.rel (0) target = $region25
    $region24: #{discriminator_forward.1} parent=1 // pred_region
      %s620 = ssub.s32 32, 32
      %621 = vsyncadd [#allocation5], %s620
      %s623 = sshll.u32 [#allocation4], 4
      %s624 = int_to_ptr.vmem [resolvable:$true] %s623
      %626 = dma.vmem_to_hbm [thread:$0]  %s624, 32, %s5, [#allocation5]
    $region25: #{discriminator_forward.1} parent=1 // pred_fallthru
      _
    // Predicated region
    $region26: #{discriminator_forward.1} parent=1 // pred_check
      _
    $region27: #{discriminator_forward.1} parent=1 // pred_check_branch
      %628 = sbr.rel (0) target = $region29
    $region28: #{discriminator_forward.1} parent=1 // pred_region
      %629 = dma.done [#allocation3], 32
    $region29: #{discriminator_forward.1} parent=1 // pred_fallthru
      _
    // Predicated region
    $region30: #{discriminator_forward.1} parent=1 // pred_check
      _
    $region31: #{discriminator_forward.1} parent=1 // pred_check_branch
      %631 = sbr.rel (0) target = $region33
    $region32: #{discriminator_forward.1} parent=1 // pred_region
      %632 = dma.done [#allocation5], 32
    $region33: #{discriminator_forward.1} parent=1 // pred_fallthru
      _
    %633 = vsyncpa [#allocation3], 1
    %634 = vsyncpa [#allocation5], 1

</llo_original>
